<compile_context>
chip_gen: v7x
topology: tpu7x:2x2x1
jax: 0.10.0
libtpu: 0.0.40
codegen_flags: <defaults>
</compile_context>

<pallas_src>
import functools

import jax
import jax.numpy as jnp
from jax.experimental import pallas as pl
from jax.experimental.pallas import tpu as pltpu


def _round_up(x: int, m: int) -> int:
    return ((x + m - 1) // m) * m


def bow_kernel(x_ref, w_ref, b_ref, o_ref, acc_ref):
    # x_ref: (tB, tV) bf16 | w_ref: (1, tV) f32 | b_ref: (1,) f32 in SMEM
    # o_ref: (tB, 1) f32   | acc_ref: (tB, 1) f32 VMEM scratch
    k = pl.program_id(1)

    @pl.when(k == 0)
    def _init():
        acc_ref[...] = jnp.zeros_like(acc_ref)

    x = x_ref[...].astype(jnp.float32)          # widen bf16 -> f32 in-vreg (VPU)
    w = w_ref[...]                              # (1, tV), lane-dense
    # Broadcast multiply + lane-axis reduction (XLU) -> (tB, 1) partial dot.
    acc_ref[...] += jnp.sum(x * w, axis=-1, keepdims=True)

    @pl.when(k == pl.num_programs(1) - 1)
    def _finalize():
        logits = acc_ref[...] + b_ref[0]        # bias from SMEM, off the hot path
        o_ref[...] = jax.nn.sigmoid(logits).astype(o_ref.dtype)


@functools.partial(jax.jit, static_argnames=("tile_b", "tile_v"))
def bow_classifier(bow_vec, weight, bias, *, tile_b=256, tile_v=2048):
    """Pallas equivalent of F.sigmoid(nn.Linear(vocab_size, 1)(bow_vec)).

    bow_vec: (B, V) float   |  weight: (1, V) float (PyTorch nn.Linear layout)
    bias:    (1,)   float   |  returns (B, 1) float32
    """
    B, V = bow_vec.shape

    # Tile sizes: clip defaults to the (padded) problem size, keep (8, 128) alignment.
    tb = min(tile_b, _round_up(B, 8))
    tv = min(tile_v, _round_up(V, 128))
    B_pad = _round_up(B, tb)
    V_pad = _round_up(V, tv)

    # bf16 stream for x (the HBM-bound operand); zero-pad to tile multiples.
    x = bow_vec.astype(jnp.bfloat16)
    if (B_pad, V_pad) != (B, V):
        x = jnp.pad(x, ((0, B_pad - B), (0, V_pad - V)))

    # Lane-dense weight (1, V_pad) in f32; zero padding is exact.
    w = weight.astype(jnp.float32).reshape(1, V)
    if V_pad != V:
        w = jnp.pad(w, ((0, 0), (0, V_pad - V)))

    b = bias.astype(jnp.float32).reshape((1,))

    grid = (B_pad // tb, V_pad // tv)

    bytes_accessed = int(
        B_pad * V_pad * 2      # x (bf16)
        + V_pad * 4            # weight (f32)
        + 4                    # bias
        + B_pad * 4            # output
    )

    out = pl.pallas_call(
        bow_kernel,
        out_shape=jax.ShapeDtypeStruct((B_pad, 1), jnp.float32),
        grid_spec=pltpu.PrefetchScalarGridSpec(
            num_scalar_prefetch=0,
            grid=grid,
            in_specs=[
                pl.BlockSpec((tb, tv), lambda i, k: (i, k)),       # x tile
                pl.BlockSpec((1, tv), lambda i, k: (0, k)),        # weight tile
                pl.BlockSpec(memory_space=pltpu.MemorySpace.SMEM),  # bias scalar
            ],
            out_specs=pl.BlockSpec((tb, 1), lambda i, k: (i, 0)),
            scratch_shapes=[pltpu.VMEM((tb, 1), jnp.float32)],
        ),
        compiler_params=pltpu.CompilerParams(
            dimension_semantics=("parallel", "arbitrary"),
        ),
        cost_estimate=pl.CostEstimate(
            flops=int(2 * B_pad * V_pad),
            transcendentals=int(B_pad),
            bytes_accessed=bytes_accessed,
        ),
    )(x, w, b)

    return out[:B]


if __name__ == "__main__":
    key = jax.random.PRNGKey(0)
    k_x, k_w, k_b = jax.random.split(key, 3)

    # Small, deliberately non-aligned shapes to exercise padding + multi-step grid.
    batch = 13
    vocab_size = 300

    # Synthetic bag-of-words counts (non-negative) and nn.Linear(vocab_size, 1) params.
    bow_vec = jax.random.uniform(k_x, (batch, vocab_size), dtype=jnp.float32)
    weight = jax.random.normal(k_w, (1, vocab_size), dtype=jnp.float32) * 0.1
    bias = jax.random.normal(k_b, (1,), dtype=jnp.float32) * 0.1

    # Small tiles in the demo so the grid is (2, 3) and the reduction loop runs.
    out = bow_classifier(bow_vec, weight, bias, tile_b=8, tile_v=128)
    out = jax.block_until_ready(out)
    assert out.shape == (batch, 1)

    # Reference using the same bf16 input cast (kernel accumulates in f32).
    x_ref32 = bow_vec.astype(jnp.bfloat16).astype(jnp.float32)
    ref_bf16_in = jax.nn.sigmoid(x_ref32 @ weight.T + bias)
    assert jnp.allclose(out, ref_bf16_in, atol=1e-5), (out, ref_bf16_in)

    # Loose check against the exact f32 reference (bf16 input rounding only).
    ref_exact = jax.nn.sigmoid(bow_vec @ weight.T + bias)
    assert jnp.allclose(out, ref_exact, atol=1e-2), (out, ref_exact)

    print("KERNEL_OK")
</pallas_src>

<mosaic_0001>
module attributes {stable_mosaic.version = 11 : i64} {
  func.func @bow_kernel(%arg0: i32, %arg1: i32, %arg2: memref<8x128xbf16, #tpu.memory_space<vmem>>, %arg3: memref<1x128xf32, #tpu.memory_space<vmem>>, %arg4: memref<1xf32, #tpu.memory_space<smem>>, %arg5: memref<8x1xf32, #tpu.memory_space<vmem>>, %arg6: memref<8x1xf32, #tpu.memory_space<vmem>>) attributes {dimension_semantics = [#tpu.dimension_semantics<parallel>, #tpu.dimension_semantics<arbitrary>], iteration_bounds = array<i64: 2, 3>, scalar_prefetch = 0 : i64, scratch_operands = 1 : i64, tpu.core_type = #tpu.core_type<tc>, window_params = [{transform_indices = @transform_0, window_bounds = array<i64: 8, 128>}, {transform_indices = @transform_1, window_bounds = array<i64: 1, 128>}, {transform_indices = @transform_2, window_bounds = array<i64: 1>}, {transform_indices = @transform_3, window_bounds = array<i64: 8, 1>}]} {
    %c0_i32 = arith.constant 0 : i32
    %0 = arith.cmpi eq, %arg1, %c0_i32 : i32
    %1 = arith.extui %0 : i1 to i32
    %c0_i32_0 = arith.constant 0 : i32
    %2 = arith.cmpi ne, %1, %c0_i32_0 : i32
    scf.if %2 {
      %cst_9 = arith.constant 0.000000e+00 : f32
      %16 = vector.broadcast %cst_9 : f32 to vector<8x1xf32>
      %c0_10 = arith.constant 0 : index
      %c0_11 = arith.constant 0 : index
      %17 = vector.load %arg6[%c0_10, %c0_11] : memref<8x1xf32, #tpu.memory_space<vmem>>, vector<8x1xf32>
      tpu.vector_store %arg6[%c0_10, %c0_11], %16 {strides = array<i32>} : memref<8x1xf32, #tpu.memory_space<vmem>>, vector<8x1xf32>,
    } else {
    }
    %c0 = arith.constant 0 : index
    %c0_1 = arith.constant 0 : index
    %3 = vector.load %arg2[%c0, %c0_1] : memref<8x128xbf16, #tpu.memory_space<vmem>>, vector<8x128xbf16>
    %4 = arith.extf %3 : vector<8x128xbf16> to vector<8x128xf32>
    %c0_2 = arith.constant 0 : index
    %c0_3 = arith.constant 0 : index
    %5 = vector.load %arg3[%c0_2, %c0_3] : memref<1x128xf32, #tpu.memory_space<vmem>>, vector<1x128xf32>
    %c0_4 = arith.constant 0 : index
    %c0_5 = arith.constant 0 : index
    %6 = vector.load %arg6[%c0_4, %c0_5] : memref<8x1xf32, #tpu.memory_space<vmem>>, vector<8x1xf32>
    %7 = vector.broadcast %5 : vector<1x128xf32> to vector<8x128xf32>
    %8 = arith.mulf %4, %7 : vector<8x128xf32>
    %cst = arith.constant dense<0.000000e+00> : vector<8xf32>
    %9 = vector.multi_reduction <add>, %8, %cst [1] : vector<8x128xf32> to vector<8xf32>
    %10 = vector.shape_cast %9 : vector<8xf32> to vector<8x1xf32>
    %11 = arith.addf %6, %10 : vector<8x1xf32>
    %c0_6 = arith.constant 0 : index
    %c0_7 = arith.constant 0 : index
    %12 = vector.load %arg6[%c0_6, %c0_7] : memref<8x1xf32, #tpu.memory_space<vmem>>, vector<8x1xf32>
    tpu.vector_store %arg6[%c0_6, %c0_7], %11 {strides = array<i32>} : memref<8x1xf32, #tpu.memory_space<vmem>>, vector<8x1xf32>,
    %c2_i32 = arith.constant 2 : i32
    %13 = arith.cmpi eq, %arg1, %c2_i32 : i32
    %14 = arith.extui %13 : i1 to i32
    %c0_i32_8 = arith.constant 0 : i32
    %15 = arith.cmpi ne, %14, %c0_i32_8 : i32
    scf.if %15 {
      %c0_9 = arith.constant 0 : index
      %c0_10 = arith.constant 0 : index
      %16 = vector.load %arg6[%c0_9, %c0_10] : memref<8x1xf32, #tpu.memory_space<vmem>>, vector<8x1xf32>
      %c0_11 = arith.constant 0 : index
      %17 = memref.load %arg4[%c0_11] : memref<1xf32, #tpu.memory_space<smem>>
      %18 = vector.broadcast %17 : f32 to vector<8x1xf32>
      %19 = arith.addf %16, %18 : vector<8x1xf32>
      %20 = arith.negf %19 : vector<8x1xf32>
      %21 = math.exp %20 : vector<8x1xf32>
      %cst_12 = arith.constant 1.000000e+00 : f32
      %22 = vector.broadcast %cst_12 : f32 to vector<8x1xf32>
      %23 = arith.addf %22, %21 : vector<8x1xf32>
      %24 = arith.divf %22, %23 : vector<8x1xf32>
      %c0_13 = arith.constant 0 : index
      %c0_14 = arith.constant 0 : index
      %25 = vector.load %arg5[%c0_13, %c0_14] : memref<8x1xf32, #tpu.memory_space<vmem>>, vector<8x1xf32>
      tpu.vector_store %arg5[%c0_13, %c0_14], %24 {strides = array<i32>} : memref<8x1xf32, #tpu.memory_space<vmem>>, vector<8x1xf32>,
    } else {
    }
    return
  }
  func.func @transform_0(%arg0: i32, %arg1: i32) -> (i32, i32) {
    %c0_i32 = arith.constant 0 : i32
    return %arg0, %arg1 : i32, i32
  }
  func.func @transform_1(%arg0: i32, %arg1: i32) -> (i32, i32) {
    %c0_i32 = arith.constant 0 : i32
    %c0_i32_0 = arith.constant 0 : i32
    return %c0_i32, %arg1 : i32, i32
  }
  func.func @transform_2(%arg0: i32, %arg1: i32) -> i32 {
    %c0_i32 = arith.constant 0 : i32
    %c0_i32_0 = arith.constant 0 : i32
    return %c0_i32 : i32
  }
  func.func @transform_3(%arg0: i32, %arg1: i32) -> (i32, i32) {
    %c0_i32 = arith.constant 0 : i32
    %c0_i32_0 = arith.constant 0 : i32
    return %arg0, %c0_i32 : i32, i32
  }
}

</mosaic_0001>

<llo_original>
// kernel: bow_classifier.1
$region0: #{bow_classifier.1}
  #allocation0 [shape = 'u32[]', space=smem, size = 0x4, offset = 0x4, fixed_abs, tag = 'smem constant byte address 0x4 - core index']
  #allocation1 [shape = 'u32[144,128]{1,0:T(1,128)}', space=vmem, size = 0x12000, scoped, tag = 'internal scratch']
  #allocation2 [shape = 'f32[8,1]{1,0:T(8,128)}', space=vmem, size = 0x1000, scoped, tag = 'scratch operand']
  #allocation3 [shape = 'f32[1]{0:T(128)S(6)}', space=smem, size = 0x200, scoped, tag = 'scoped memory for bow_classifier.1']
  %s0 = inlined_call_operand.vmem [shape: bf16[16,384], index: 0, kind: input, shape index: {}]
  %s1 = inlined_call_operand.vmem [shape: f32[1,384], index: 1, kind: input, shape index: {}]
  %s2 = inlined_call_operand.<no memory space> [shape: f32[1], index: 2, kind: input, shape index: {}]
  %s3 = inlined_call_operand.vmem [shape: f32[16,1], index: 3, kind: output, shape index: {}]
  %s4 = sld [smem:[#allocation0]]
  $region53: #{bow_classifier.1} parent=0
    _
  %s6 = ssub.s32 1, %s4
  %s7 = scalar_select 0, %s6, %s4
  %8 = sst [smem:[#allocation3]] %s2
  loop: start=0, step=1, limit=8
  $region2: #{bow_classifier.1} parent=0 // loop_pre_header
    _
  $region3: #{bow_classifier.1} parent=0 // loop_header
    %s10 = sphi 0, %s14
    %p11 = scmp.ge.s32.totalorder %s10, 8
    %s17 = sphi 0, %s29
    %s18 = sphi 0, %s25
    %s19 = sphi 0, %s17
    %s20 = sphi 0, %s18
    %s21 = sphi 0, %s19
    %s22 = sphi 0, %s20
    %s34 = sphi 0, %s36
    %s37 = sphi 0, %s34
    %s38 = sphi 0, %s37
    %s54 = sphi 0, %s38
    %s60 = sphi 0, %s62
    %s63 = sphi 0, %s60
    %s64 = sphi 0, %s63
    %s80 = sphi 0, %s64
    %s84 = sphi 0, %s84
    %s86 = sphi 0, %s84
    %s87 = sphi 0, %s86
    %s101 = sphi 0, %s87
    %s107 = sphi 0, %s109
    %s110 = sphi 0, %s107
    %s111 = sphi 0, %s110
    %s127 = sphi 0, %s111
  $region4: #{bow_classifier.1} parent=0 // loop_header_branch
    %13 = sbr.rel (%p11) target = $region8
  $region5: #{bow_classifier.1} parent=0 // loop_body
    %s15 = ssub.s32 %s10, 1
    %s16 = ssub.s32 %s10, 2
    %s23 = sadd.s32 1, %s18
    %p24 = scmp.ge.s32.totalorder %s23, 3
    %s25 = scalar_select %p24, 0, %s23
    %s26 = sadd.s32 1, %s17
    %s27 = scalar_select %p24, %s26, %s17
    %p28 = scmp.ge.s32.totalorder %s27, 2
    %s29 = scalar_select %p28, 0, %s27
    %s30 = ssub.s32 %s17, %s29
    %s31 = ssub.s32 %s18, %s25
    %s32 = sor.u32 %s30, %s31
    %p33 = scmp.eq.s32.totalorder %s32, 0
    %s35 = sadd.s32 %s34, 1
    %s36 = scalar_select %p33, %s34, %s35
    %p39 = pneg %p33
    %p40 = scmp.eq.s32.totalorder %s10, 5
    %p41 = por %p39, %p40
    %p42 = scmp.ne.s32.totalorder %s34, %s37
    %p43 = scmp.eq.s32.totalorder %s10, 0
    %p44 = por %p42, %p43
    %p45 = scmp.ne.s32.totalorder %s34, %s37
    %p46 = scmp.eq.s32.totalorder %s15, 5
    %p47 = por %p45, %p46
    %p48 = scmp.ne.s32.totalorder %s37, %s38
    %p49 = scmp.eq.s32.totalorder %s15, 0
    %p50 = por %p48, %p49
    %p51 = scmp.ne.s32.totalorder %s37, %s38
    %p52 = scmp.eq.s32.totalorder %s16, 5
    %p53 = por %p51, %p52
    %p55 = scmp.ne.s32.totalorder %s38, %s54
    %p56 = scmp.eq.s32.totalorder %s16, 0
    %p57 = por %p55, %p56
    %s58 = ssub.s32 %s18, %s25
    %p59 = scmp.eq.s32.totalorder %s58, 0
    %s61 = sadd.s32 %s60, 1
    %s62 = scalar_select %p59, %s60, %s61
    %p65 = pneg %p59
    %p66 = scmp.eq.s32.totalorder %s10, 5
    %p67 = por %p65, %p66
    %p68 = scmp.ne.s32.totalorder %s60, %s63
    %p69 = scmp.eq.s32.totalorder %s10, 0
    %p70 = por %p68, %p69
    %p71 = scmp.ne.s32.totalorder %s60, %s63
    %p72 = scmp.eq.s32.totalorder %s15, 5
    %p73 = por %p71, %p72
    %p74 = scmp.ne.s32.totalorder %s63, %s64
    %p75 = scmp.eq.s32.totalorder %s15, 0
    %p76 = por %p74, %p75
    %p77 = scmp.ne.s32.totalorder %s63, %s64
    %p78 = scmp.eq.s32.totalorder %s16, 5
    %p79 = por %p77, %p78
    %p81 = scmp.ne.s32.totalorder %s64, %s80
    %p82 = scmp.eq.s32.totalorder %s16, 0
    %p83 = por %p81, %p82
    %s85 = sadd.s32 %s84, 1
    %p88 = scmp.eq.s32.totalorder %s10, 5
    %p89 = scmp.ne.s32.totalorder %s84, %s86
    %p90 = scmp.eq.s32.totalorder %s10, 0
    %p91 = por %p89, %p90
    %p92 = scmp.ne.s32.totalorder %s84, %s86
    %p93 = scmp.eq.s32.totalorder %s15, 5
    %p94 = por %p92, %p93
    %p95 = scmp.ne.s32.totalorder %s86, %s87
    %p96 = scmp.eq.s32.totalorder %s15, 0
    %p97 = por %p95, %p96
    %p98 = scmp.ne.s32.totalorder %s86, %s87
    %p99 = scmp.eq.s32.totalorder %s16, 5
    %p100 = por %p98, %p99
    %p102 = scmp.ne.s32.totalorder %s87, %s101
    %p103 = scmp.eq.s32.totalorder %s16, 0
    %p104 = por %p102, %p103
    %s105 = ssub.s32 %s17, %s29
    %p106 = scmp.eq.s32.totalorder %s105, 0
    %s108 = sadd.s32 %s107, 1
    %s109 = scalar_select %p106, %s107, %s108
    %p112 = pneg %p106
    %p113 = scmp.eq.s32.totalorder %s10, 5
    %p114 = por %p112, %p113
    %p115 = scmp.ne.s32.totalorder %s107, %s110
    %p116 = scmp.eq.s32.totalorder %s10, 0
    %p117 = por %p115, %p116
    %p118 = scmp.ne.s32.totalorder %s107, %s110
    %p119 = scmp.eq.s32.totalorder %s15, 5
    %p120 = por %p118, %p119
    %p121 = scmp.ne.s32.totalorder %s110, %s111
    %p122 = scmp.eq.s32.totalorder %s15, 0
    %p123 = por %p121, %p122
    %p124 = scmp.ne.s32.totalorder %s110, %s111
    %p125 = scmp.eq.s32.totalorder %s16, 5
    %p126 = por %p124, %p125
    %p128 = scmp.ne.s32.totalorder %s111, %s127
    %p129 = scmp.eq.s32.totalorder %s16, 0
    %p130 = por %p128, %p129
    %p131 = scmp.le.s32.totalorder 1, %s10
    %p132 = scmp.lt.s32.totalorder %s10, 7
    %p133 = pnand %p131, %p132
    %p134 = pneg %p133
    // Predicated region
    $region9: #{bow_classifier.1} parent=5 // pred_check
      _
    $region10: #{bow_classifier.1} parent=5 // pred_check_branch
      %136 = sbr.rel (%p133) target = $region12
    $region11: #{bow_classifier.1} parent=5 // pred_region
      %s137 = ssub.s32 %s10, 1
      // Predicated region
      $region13: #{bow_classifier.1} parent=11 // pred_check
        %p138 = pneg %p97
      $region14: #{bow_classifier.1} parent=11 // pred_check_branch
        %140 = sbr.rel (%p138) target = $region16
      $region15: #{bow_classifier.1} parent=11 // pred_region
        _
      $region16: #{bow_classifier.1} parent=11 // pred_fallthru
        _
    $region12: #{bow_classifier.1} parent=5 // pred_fallthru
      _
    %p141 = scmp.lt.s32.totalorder %s10, 6
    // Predicated region
    $region17: #{bow_classifier.1} parent=5 // pred_check
      %p142 = pneg %p141
    $region18: #{bow_classifier.1} parent=5 // pred_check_branch
      %144 = sbr.rel (%p142) target = $region20
    $region19: #{bow_classifier.1} parent=5 // pred_region
      // Predicated region
      $region21: #{bow_classifier.1} parent=19 // pred_check
        %p145 = pneg %p44
      $region22: #{bow_classifier.1} parent=19 // pred_check_branch
        %147 = sbr.rel (%p145) target = $region24
      $region23: #{bow_classifier.1} parent=19 // pred_region
        %p148 = scmp.lt.s32.totalorder %s17, 1
        %s149 = scalar_select %p148, %s17, 1
        %p150 = scmp.lt.s32.totalorder %s18, 2
        %s151 = scalar_select %p150, %s18, 2
        %s152 = smul.addr %s149, 3
        %s153 = sadd.s32 %s151, %s152
        %s154 = smul.addr %s153, 4
        %s155 = scalar_lea.vmem %s0, %s154
      $region24: #{bow_classifier.1} parent=19 // pred_fallthru
        _
      // Predicated region
      $region25: #{bow_classifier.1} parent=19 // pred_check
        %p156 = pneg %p70
      $region26: #{bow_classifier.1} parent=19 // pred_check_branch
        %158 = sbr.rel (%p156) target = $region28
      $region27: #{bow_classifier.1} parent=19 // pred_region
        %p159 = scmp.lt.s32.totalorder %s18, 2
        %s160 = scalar_select %p159, %s18, 2
        %s161 = scalar_lea.vmem %s1, %s160
      $region28: #{bow_classifier.1} parent=19 // pred_fallthru
        _
    $region20: #{bow_classifier.1} parent=5 // pred_fallthru
      _
    %p162 = scmp.le.s32.totalorder 1, %s10
    %p163 = scmp.lt.s32.totalorder %s10, 7
    %p164 = pnand %p162, %p163
    %p165 = pneg %p164
    // Predicated region
    $region29: #{bow_classifier.1} parent=5 // pred_check
      _
    $region30: #{bow_classifier.1} parent=5 // pred_check_branch
      %167 = sbr.rel (%p164) target = $region32
    $region31: #{bow_classifier.1} parent=5 // pred_region
      %s168 = ssub.s32 %s10, 1
      %p169 = scmp.lt.s32.totalorder %s19, 1
      %s170 = scalar_select %p169, %s19, 1
      %p171 = scmp.lt.s32.totalorder %s20, 2
      %s172 = scalar_select %p171, %s20, 2
      %s173 = smul.addr %s170, 3
      %s174 = sadd.s32 %s172, %s173
      %s175 = smul.addr %s174, 4
      %s176 = scalar_lea.vmem %s0, %s175
      %p177 = pneg %p50
      %p178 = pneg %p47
      %p179 = scmp.lt.s32.totalorder %s20, 2
      %s180 = scalar_select %p179, %s20, 2
      %s181 = scalar_lea.vmem %s1, %s180
      %p182 = pneg %p76
      %p183 = pneg %p73
      %p184 = pneg %p97
      %p185 = pneg %p94
      %p186 = pneg %p123
      %p187 = pneg %p120
      %p188 = scmp.lt.s32.totalorder %s19, 1
      %s189 = scalar_select %p188, %s19, 1
      %s190 = smul.addr %s189, 8
      %s191 = scalar_lea.vmem %s3, %s190
      %p192 = scmp.lt.s32.totalorder %s19, 1
      %s193 = scalar_select %p192, %s19, 1
      %p194 = scmp.lt.s32.totalorder %s20, 2
      %s195 = scalar_select %p194, %s20, 2
      %s196 = smul.addr %s193, 3
      %s197 = sadd.s32 %s195, %s196
      %s198 = smul.addr %s197, 4
      %s199 = scalar_lea.vmem %s0, %s198
      %p200 = scmp.lt.s32.totalorder %s20, 2
      %s201 = scalar_select %p200, %s20, 2
      %s202 = scalar_lea.vmem %s1, %s201
      %p203 = scmp.lt.s32.totalorder %s19, 1
      %s204 = scalar_select %p203, %s19, 1
      %s205 = smul.addr %s204, 8
      %s206 = scalar_lea.vmem %s3, %s205
      %p207 = scmp.eq.s32.totalorder %s20, 0
      // Predicated region
      $region33: #{bow_classifier.1} parent=31 // pred_check
        %p208 = pneg %p207
      $region34: #{bow_classifier.1} parent=31 // pred_check_branch
        %210 = sbr.rel (%p208) target = $region36
      $region35: #{bow_classifier.1} parent=31 // pred_region
        %vm211 = vcmask 7168
        %212 = vst.msk [vmem:[#allocation2] sm:$0xff] %vm211, 0.0
      $region36: #{bow_classifier.1} parent=31 // pred_fallthru
        _
      %v213 = vld [vmem:[%s199] sm:$0xf]
      %v214 = vunpack.c.l.bf16 %v213
      %v215 = vld [vmem:[%s202] sm:$0x1]
      %v216 = vld [vmem:[#allocation2] sm:$0xff]
      %v218 = vlaneseq
      %v219 = vshrl.u32 %v218, 7
      %v220 = vsub.s32 0, %v219
      %v221 = vrot.slane %v215, %v220
      %v223 = vmul.f32 %v214, %v221
      %224 = vadd.xlane.f32.xlu0 %v223
      %v225 = vpop.xlane.xlu0 %224
      %v226 = vadd.f32 %v216, %v225
      %vm227 = vcmask 7168
      %228 = vst.msk [vmem:[#allocation2] sm:$0xff] %vm227, %v226
      %p229 = scmp.eq.s32.totalorder %s20, 2
      // Predicated region
      $region37: #{bow_classifier.1} parent=31 // pred_check
        %p230 = pneg %p229
      $region38: #{bow_classifier.1} parent=31 // pred_check_branch
        %232 = sbr.rel (%p230) target = $region40
      $region39: #{bow_classifier.1} parent=31 // pred_region
        %v233 = vld [vmem:[#allocation2] sm:$0xff]
        %s234 = sld [smem:[#allocation3]]
        %v235 = vstv %s234
        %v236 = vadd.f32 %v233, %v235
        %v237 = vxor.u32 %v236, 2147483648
        %v238 = vmul.f32 %v237, 1.442695
        %v239 = vpow.pop %v238
        %v240 = vadd.f32 %v239, 1.0
        %v241 = vrcp.pop %v240
        %v242 = vmul.f32 1.0, %v241
        %243 = vst.msk [vmem:[%s206] sm:$0xff] %vm227, %v242
      $region40: #{bow_classifier.1} parent=31 // pred_fallthru
        _
      %p244 = scmp.lt.s32.totalorder %s19, 1
      %s245 = scalar_select %p244, %s19, 1
      %s246 = smul.addr %s245, 8
      %s247 = scalar_lea.vmem %s3, %s246
      // Predicated region
      $region41: #{bow_classifier.1} parent=31 // pred_check
        %p248 = pneg %p120
      $region42: #{bow_classifier.1} parent=31 // pred_check_branch
        %250 = sbr.rel (%p248) target = $region44
      $region43: #{bow_classifier.1} parent=31 // pred_region
        _
      $region44: #{bow_classifier.1} parent=31 // pred_fallthru
        _
    $region32: #{bow_classifier.1} parent=5 // pred_fallthru
      _
    %p251 = scmp.le.s32.totalorder 2, %s10
    // Predicated region
    $region45: #{bow_classifier.1} parent=5 // pred_check
      %p252 = pneg %p251
    $region46: #{bow_classifier.1} parent=5 // pred_check_branch
      %254 = sbr.rel (%p252) target = $region48
    $region47: #{bow_classifier.1} parent=5 // pred_region
      %s255 = ssub.s32 %s10, 2
      // Predicated region
      $region49: #{bow_classifier.1} parent=47 // pred_check
        %p256 = pneg %p126
      $region50: #{bow_classifier.1} parent=47 // pred_check_branch
        %258 = sbr.rel (%p256) target = $region52
      $region51: #{bow_classifier.1} parent=47 // pred_region
        %p259 = scmp.lt.s32.totalorder %s21, 1
        %s260 = scalar_select %p259, %s21, 1
        %s261 = smul.addr %s260, 8
        %s262 = scalar_lea.vmem %s3, %s261
      $region52: #{bow_classifier.1} parent=47 // pred_fallthru
        _
    $region48: #{bow_classifier.1} parent=5 // pred_fallthru
      _
  $region6: #{bow_classifier.1} parent=0 // loop_footer
    %s14 = sadd.s32 1, %s10
  $region7: #{bow_classifier.1} parent=0 // loop_footer_branch
    %9 = sbr.rel target = $region3
  $region8: #{bow_classifier.1} parent=0 // loop_exit
    _

</llo_original>
